<compile_context>
chip_gen: v7x
topology: tpu7x:2x2x1
jax: 0.10.0
libtpu: 0.0.40
codegen_flags: <defaults>
</compile_context>

<pallas_src>
import functools

import jax
import jax.numpy as jnp
from jax.experimental import pallas as pl
from jax.experimental.pallas import tpu as pltpu

_NUM_CLASSES = 4
_LANE = 128


def _emotion_head_kernel(h_ref, m_ref, w1a_ref, w1b_ref, b1_ref, w2_ref,
                         b2_ref, out_ref, sum_acc, max_acc, cnt_acc):
    """Masked mean/max pooling over sequence tiles + 2-layer MLP head.

    h_ref   : (TB, TS, D)   hidden-state tile (any float dtype; cast to f32)
    m_ref   : (TB, TS)      attention-mask tile (float32 0/1)
    w1a_ref : (D, HP)       fc1 weight, "mean" half (rows 0:D of W1^T), padded
    w1b_ref : (D, HP)       fc1 weight, "max"  half (rows D:2D of W1^T), padded
    b1_ref  : (1, HP)
    w2_ref  : (HP, NP)      fc2 weight (padded to lane width)
    b2_ref  : (1, NP)
    out_ref : (TB, NP)      lane-dense padded logits (cols 0:4 are real)
    sum_acc : (TB, D) f32   running masked sum
    max_acc : (TB, D) f32   running masked max
    cnt_acc : (TB, 1) f32   running mask count
    """
    s = pl.program_id(1)

    @pl.when(s == 0)
    def _init():
        sum_acc[...] = jnp.zeros_like(sum_acc)
        max_acc[...] = jnp.full_like(max_acc, -jnp.inf)
        cnt_acc[...] = jnp.zeros_like(cnt_acc)

    # Pooling phase: f32 accumulation regardless of the DMA dtype of h.
    h = h_ref[...].astype(jnp.float32)               # (TB, TS, D)
    m = m_ref[...].astype(jnp.float32)               # (TB, TS)
    masked = h * m[:, :, None]                       # (TB, TS, D)

    sum_acc[...] += jnp.sum(masked, axis=1)                        # (TB, D)
    max_acc[...] = jnp.maximum(max_acc[...], jnp.max(masked, axis=1))
    cnt_acc[...] += jnp.sum(m, axis=1, keepdims=True)              # (TB, 1)

    @pl.when(s == pl.num_programs(1) - 1)
    def _finalize():
        mean_emb = sum_acc[...] / jnp.maximum(cnt_acc[...], 1e-9)  # (TB, D)
        max_emb = max_acc[...]                                     # (TB, D)
        # fc1(hstack(mean, max)) == mean @ W1a + max @ W1b + b1
        z1 = (jnp.dot(mean_emb, w1a_ref[...], preferred_element_type=jnp.float32)
              + jnp.dot(max_emb, w1b_ref[...], preferred_element_type=jnp.float32)
              + b1_ref[...])
        a1 = jnp.maximum(z1, 0.0)
        logits = (jnp.dot(a1, w2_ref[...], preferred_element_type=jnp.float32)
                  + b2_ref[...])
        out_ref[...] = logits.astype(out_ref.dtype)


def _choose_batch_tile(B):
    # (TB, TS) is the mask block: TB must be a multiple of 8 or equal B.
    if B >= 8 and B % 8 == 0:
        return 8
    return B


def _choose_seq_tile(tb, S, D, itemsize, budget_bytes=8 << 20):
    # Biggest sequence tile that (a) keeps one h buffer under `budget_bytes`
    # (so 2x double-buffering stays well inside even v7x's 64 MiB VMEM) and
    # (b) is a multiple of 128 (mask lane axis) or equal to S, and divides S.
    if tb * S * D * itemsize <= budget_bytes:
        return S
    for ts in (2048, 1024, 512, 256, 128):
        if S % ts == 0 and tb * ts * D * itemsize <= budget_bytes:
            return ts
    return S  # fallback: single (possibly large) tile


def _prep_weights(params, D):
    """Transpose to (in, out), split W1 into mean/max halves, pad to lanes."""
    H = params["b1"].shape[0]
    HP = max(_LANE, pl.cdiv(H, _LANE) * _LANE)
    NP = _LANE

    w1_t = params["w1"].T.astype(jnp.float32)        # (2D, H)
    w1a = jnp.zeros((D, HP), jnp.float32).at[:, :H].set(w1_t[:D, :])
    w1b = jnp.zeros((D, HP), jnp.float32).at[:, :H].set(w1_t[D:, :])
    b1 = jnp.zeros((1, HP), jnp.float32).at[0, :H].set(
        params["b1"].astype(jnp.float32))
    w2 = jnp.zeros((HP, NP), jnp.float32).at[:H, :_NUM_CLASSES].set(
        params["w2"].T.astype(jnp.float32))
    b2 = jnp.zeros((1, NP), jnp.float32).at[0, :_NUM_CLASSES].set(
        params["b2"].astype(jnp.float32))
    return w1a, w1b, b1, w2, b2, HP, NP


def emotion_classifier_head(last_hidden, attention_mask, params):
    """Pooling + MLP head of LlamaEmotionClassifier.forward as a Pallas kernel.

    last_hidden    : (B, S, D) float32 or bfloat16 (pass bf16 to halve DMA).
    attention_mask : (B, S) int or float 0/1.
    params         : dict with w1 (H, 2D), b1 (H,), w2 (4, H), b2 (4,)
                     in PyTorch (out_features, in_features) convention.
    Returns logits (B, 4) float32.
    """
    B, S, D = last_hidden.shape
    mask = attention_mask.astype(jnp.float32)

    w1a, w1b, b1, w2, b2, HP, NP = _prep_weights(params, D)

    TB = _choose_batch_tile(B)
    TS = _choose_seq_tile(TB, S, D, last_hidden.dtype.itemsize)
    grid = (B // TB, S // TS)

    h_tile_bytes = TB * TS * D * last_hidden.dtype.itemsize
    vmem_limit = int(min(64 << 20, max(32 << 20, 4 * h_tile_bytes + (4 << 20))))

    const = lambda b, s: (0, 0)  # weights: fetched once, resident across grid
    out_padded = pl.pallas_call(
        _emotion_head_kernel,
        out_shape=jax.ShapeDtypeStruct((B, NP), jnp.float32),
        grid_spec=pltpu.PrefetchScalarGridSpec(
            num_scalar_prefetch=0,
            grid=grid,
            in_specs=[
                pl.BlockSpec((TB, TS, D), lambda b, s: (b, s, 0)),   # h tiles
                pl.BlockSpec((TB, TS), lambda b, s: (b, s)),         # mask
                pl.BlockSpec((D, HP), const),                        # w1a
                pl.BlockSpec((D, HP), const),                        # w1b
                pl.BlockSpec((1, HP), const),                        # b1
                pl.BlockSpec((HP, NP), const),                       # w2
                pl.BlockSpec((1, NP), const),                        # b2
            ],
            out_specs=pl.BlockSpec((TB, NP), lambda b, s: (b, 0)),
            scratch_shapes=[
                pltpu.VMEM((TB, D), jnp.float32),   # sum accumulator
                pltpu.VMEM((TB, D), jnp.float32),   # max accumulator
                pltpu.VMEM((TB, 1), jnp.float32),   # mask count
            ],
        ),
        compiler_params=pltpu.CompilerParams(
            dimension_semantics=("parallel", "arbitrary"),
            vmem_limit_bytes=vmem_limit,
        ),
    )(last_hidden, mask, w1a, w1b, b1, w2, b2)

    return out_padded[:, :_NUM_CLASSES]


def _reference(last_hidden, attention_mask, params):
    """Pure-JAX reference replicating the PyTorch forward exactly."""
    h = last_hidden.astype(jnp.float32)
    mask = attention_mask.astype(jnp.float32)[:, :, None]
    mask_expanded = jnp.broadcast_to(mask, h.shape)
    sum_emb = jnp.sum(h * mask_expanded, axis=1)
    max_emb = jnp.max(h * mask_expanded, axis=1)
    sum_mask = jnp.clip(jnp.sum(mask_expanded, axis=1), 1e-9, None)
    mean_emb = sum_emb / sum_mask
    pooled = jnp.concatenate([mean_emb, max_emb], axis=-1)
    z1 = pooled @ params["w1"].T.astype(jnp.float32) + params["b1"]
    a1 = jnp.maximum(z1, 0.0)
    return a1 @ params["w2"].T.astype(jnp.float32) + params["b2"]


if __name__ == "__main__":
    # Small shapes consistent with the module: backbone hidden D (stand-in for
    # model.config.hidden_size), head hidden H = 32, 4 output logits.
    B, S, D, H = 2, 8, 128, 32

    key = jax.random.PRNGKey(0)
    k_h, k_w1, k_b1, k_w2, k_b2 = jax.random.split(key, 5)

    last_hidden = jax.random.normal(k_h, (B, S, D), dtype=jnp.float32)
    # Attention mask with some padding (last positions masked out).
    attention_mask = jnp.array(
        [[1, 1, 1, 1, 1, 1, 0, 0],
         [1, 1, 1, 1, 0, 0, 0, 0]], dtype=jnp.float32)

    # Deterministic parameter init (PyTorch (out, in) weight convention).
    params = {
        "w1": jax.random.uniform(k_w1, (H, 2 * D), jnp.float32, -0.1, 0.1),
        "b1": jax.random.uniform(k_b1, (H,), jnp.float32, -0.1, 0.1),
        "w2": jax.random.uniform(k_w2, (_NUM_CLASSES, H), jnp.float32, -0.1, 0.1),
        "b2": jax.random.uniform(k_b2, (_NUM_CLASSES,), jnp.float32, -0.1, 0.1),
    }

    # f32 path (exact vs reference).
    logits = emotion_classifier_head(last_hidden, attention_mask, params)
    jax.block_until_ready(logits)
    ref = _reference(last_hidden, attention_mask, params)
    assert logits.shape == (B, _NUM_CLASSES)
    assert jnp.allclose(logits, ref, atol=1e-5, rtol=1e-5), (logits, ref)

    # bf16 hidden-state path (what a Llama backbone would emit; halves DMA
    # bytes). The kernel casts to f32 after load, so it matches the reference
    # computed on the bf16-rounded hidden states.
    h_bf16 = last_hidden.astype(jnp.bfloat16)
    logits_bf16 = emotion_classifier_head(h_bf16, attention_mask, params)
    jax.block_until_ready(logits_bf16)
    ref_bf16 = _reference(h_bf16.astype(jnp.float32), attention_mask, params)
    assert jnp.allclose(logits_bf16, ref_bf16, atol=1e-4, rtol=1e-4), (
        logits_bf16, ref_bf16)

    print("KERNEL_OK")
</pallas_src>

<mosaic_0001>
module attributes {stable_mosaic.version = 11 : i64} {
  func.func @_emotion_head_kernel(%arg0: i32, %arg1: i32, %arg2: memref<2x8x128xf32, #tpu.memory_space<vmem>>, %arg3: memref<2x8xf32, #tpu.memory_space<vmem>>, %arg4: memref<128x128xf32, #tpu.memory_space<vmem>>, %arg5: memref<128x128xf32, #tpu.memory_space<vmem>>, %arg6: memref<1x128xf32, #tpu.memory_space<vmem>>, %arg7: memref<128x128xf32, #tpu.memory_space<vmem>>, %arg8: memref<1x128xf32, #tpu.memory_space<vmem>>, %arg9: memref<2x128xf32, #tpu.memory_space<vmem>>, %arg10: memref<2x128xf32, #tpu.memory_space<vmem>>, %arg11: memref<2x128xf32, #tpu.memory_space<vmem>>, %arg12: memref<2x1xf32, #tpu.memory_space<vmem>>) attributes {dimension_semantics = [#tpu.dimension_semantics<parallel>, #tpu.dimension_semantics<arbitrary>], iteration_bounds = array<i64: 1, 1>, scalar_prefetch = 0 : i64, scratch_operands = 3 : i64, tpu.core_type = #tpu.core_type<tc>, window_params = [{transform_indices = @transform_0, window_bounds = array<i64: 2, 8, 128>}, {transform_indices = @transform_1, window_bounds = array<i64: 2, 8>}, {pipeline_mode = #tpu.pipeline_mode<synchronous>, transform_indices = @transform_2, window_bounds = array<i64: 128, 128>}, {pipeline_mode = #tpu.pipeline_mode<synchronous>, transform_indices = @transform_3, window_bounds = array<i64: 128, 128>}, {pipeline_mode = #tpu.pipeline_mode<synchronous>, transform_indices = @transform_4, window_bounds = array<i64: 1, 128>}, {pipeline_mode = #tpu.pipeline_mode<synchronous>, transform_indices = @transform_5, window_bounds = array<i64: 128, 128>}, {pipeline_mode = #tpu.pipeline_mode<synchronous>, transform_indices = @transform_6, window_bounds = array<i64: 1, 128>}, {transform_indices = @transform_7, window_bounds = array<i64: 2, 128>}]} {
    %c0_i32 = arith.constant 0 : i32
    %0 = arith.cmpi eq, %arg1, %c0_i32 : i32
    %1 = arith.extui %0 : i1 to i32
    %c0_i32_0 = arith.constant 0 : i32
    %2 = arith.cmpi ne, %1, %c0_i32_0 : i32
    scf.if %2 {
      %cst_21 = arith.constant 0.000000e+00 : f32
      %24 = vector.broadcast %cst_21 : f32 to vector<2x128xf32>
      %c0_22 = arith.constant 0 : index
      %c0_23 = arith.constant 0 : index
      %25 = vector.load %arg10[%c0_22, %c0_23] : memref<2x128xf32, #tpu.memory_space<vmem>>, vector<2x128xf32>
      tpu.vector_store %arg10[%c0_22, %c0_23], %24 {strides = array<i32>} : memref<2x128xf32, #tpu.memory_space<vmem>>, vector<2x128xf32>,
      %cst_24 = arith.constant 0xFF800000 : f32
      %26 = vector.broadcast %cst_24 : f32 to vector<2x128xf32>
      %c0_25 = arith.constant 0 : index
      %c0_26 = arith.constant 0 : index
      %27 = vector.load %arg11[%c0_25, %c0_26] : memref<2x128xf32, #tpu.memory_space<vmem>>, vector<2x128xf32>
      tpu.vector_store %arg11[%c0_25, %c0_26], %26 {strides = array<i32>} : memref<2x128xf32, #tpu.memory_space<vmem>>, vector<2x128xf32>,
      %cst_27 = arith.constant 0.000000e+00 : f32
      %28 = vector.broadcast %cst_27 : f32 to vector<2x1xf32>
      %c0_28 = arith.constant 0 : index
      %c0_29 = arith.constant 0 : index
      %29 = vector.load %arg12[%c0_28, %c0_29] : memref<2x1xf32, #tpu.memory_space<vmem>>, vector<2x1xf32>
      tpu.vector_store %arg12[%c0_28, %c0_29], %28 {strides = array<i32>} : memref<2x1xf32, #tpu.memory_space<vmem>>, vector<2x1xf32>,
    } else {
    }
    %c0 = arith.constant 0 : index
    %c0_1 = arith.constant 0 : index
    %c0_2 = arith.constant 0 : index
    %3 = vector.load %arg2[%c0, %c0_1, %c0_2] : memref<2x8x128xf32, #tpu.memory_space<vmem>>, vector<2x8x128xf32>
    %c0_3 = arith.constant 0 : index
    %c0_4 = arith.constant 0 : index
    %4 = vector.load %arg3[%c0_3, %c0_4] : memref<2x8xf32, #tpu.memory_space<vmem>>, vector<2x8xf32>
    %5 = vector.shape_cast %4 : vector<2x8xf32> to vector<2x8x1xf32>
    %6 = vector.broadcast %5 : vector<2x8x1xf32> to vector<2x8x128xf32>
    %7 = arith.mulf %3, %6 : vector<2x8x128xf32>
    %c0_5 = arith.constant 0 : index
    %c0_6 = arith.constant 0 : index
    %8 = vector.load %arg10[%c0_5, %c0_6] : memref<2x128xf32, #tpu.memory_space<vmem>>, vector<2x128xf32>
    %cst = arith.constant dense<0.000000e+00> : vector<2x128xf32>
    %9 = vector.multi_reduction <add>, %7, %cst [1] : vector<2x8x128xf32> to vector<2x128xf32>
    %10 = arith.addf %8, %9 : vector<2x128xf32>
    %c0_7 = arith.constant 0 : index
    %c0_8 = arith.constant 0 : index
    %11 = vector.load %arg10[%c0_7, %c0_8] : memref<2x128xf32, #tpu.memory_space<vmem>>, vector<2x128xf32>
    tpu.vector_store %arg10[%c0_7, %c0_8], %10 {strides = array<i32>} : memref<2x128xf32, #tpu.memory_space<vmem>>, vector<2x128xf32>,
    %c0_9 = arith.constant 0 : index
    %c0_10 = arith.constant 0 : index
    %12 = vector.load %arg11[%c0_9, %c0_10] : memref<2x128xf32, #tpu.memory_space<vmem>>, vector<2x128xf32>
    %cst_11 = arith.constant dense<0xFF800000> : vector<2x128xf32>
    %13 = vector.multi_reduction <maximumf>, %7, %cst_11 [1] : vector<2x8x128xf32> to vector<2x128xf32>
    %14 = arith.maximumf %12, %13 : vector<2x128xf32>
    %c0_12 = arith.constant 0 : index
    %c0_13 = arith.constant 0 : index
    %15 = vector.load %arg11[%c0_12, %c0_13] : memref<2x128xf32, #tpu.memory_space<vmem>>, vector<2x128xf32>
    tpu.vector_store %arg11[%c0_12, %c0_13], %14 {strides = array<i32>} : memref<2x128xf32, #tpu.memory_space<vmem>>, vector<2x128xf32>,
    %c0_14 = arith.constant 0 : index
    %c0_15 = arith.constant 0 : index
    %16 = vector.load %arg12[%c0_14, %c0_15] : memref<2x1xf32, #tpu.memory_space<vmem>>, vector<2x1xf32>
    %cst_16 = arith.constant dense<0.000000e+00> : vector<2xf32>
    %17 = vector.multi_reduction <add>, %4, %cst_16 [1] : vector<2x8xf32> to vector<2xf32>
    %18 = vector.shape_cast %17 : vector<2xf32> to vector<2x1xf32>
    %19 = arith.addf %16, %18 : vector<2x1xf32>
    %c0_17 = arith.constant 0 : index
    %c0_18 = arith.constant 0 : index
    %20 = vector.load %arg12[%c0_17, %c0_18] : memref<2x1xf32, #tpu.memory_space<vmem>>, vector<2x1xf32>
    tpu.vector_store %arg12[%c0_17, %c0_18], %19 {strides = array<i32>} : memref<2x1xf32, #tpu.memory_space<vmem>>, vector<2x1xf32>,
    %c0_i32_19 = arith.constant 0 : i32
    %21 = arith.cmpi eq, %arg1, %c0_i32_19 : i32
    %22 = arith.extui %21 : i1 to i32
    %c0_i32_20 = arith.constant 0 : i32
    %23 = arith.cmpi ne, %22, %c0_i32_20 : i32
    scf.if %23 {
      %c0_21 = arith.constant 0 : index
      %c0_22 = arith.constant 0 : index
      %24 = vector.load %arg10[%c0_21, %c0_22] : memref<2x128xf32, #tpu.memory_space<vmem>>, vector<2x128xf32>
      %c0_23 = arith.constant 0 : index
      %c0_24 = arith.constant 0 : index
      %25 = vector.load %arg12[%c0_23, %c0_24] : memref<2x1xf32, #tpu.memory_space<vmem>>, vector<2x1xf32>
      %cst_25 = arith.constant 9.99999971E-10 : f32
      %26 = vector.broadcast %cst_25 : f32 to vector<2x1xf32>
      %27 = arith.maximumf %25, %26 : vector<2x1xf32>
      %28 = vector.broadcast %27 : vector<2x1xf32> to vector<2x128xf32>
      %29 = arith.divf %24, %28 : vector<2x128xf32>
      %c0_26 = arith.constant 0 : index
      %c0_27 = arith.constant 0 : index
      %30 = vector.load %arg11[%c0_26, %c0_27] : memref<2x128xf32, #tpu.memory_space<vmem>>, vector<2x128xf32>
      %c0_28 = arith.constant 0 : index
      %c0_29 = arith.constant 0 : index
      %31 = vector.load %arg4[%c0_28, %c0_29] : memref<128x128xf32, #tpu.memory_space<vmem>>, vector<128x128xf32>
      %cst_30 = arith.constant dense<0.000000e+00> : vector<2x128xf32>
      %32 = tpu.matmul %29, %31, %cst_30 {dimension_numbers = #tpu.dot_dimension_numbers<[1], [0], [0], [1], [0, 0, 1, 1], [], []>} : vector<2x128xf32>, vector<128x128xf32>, vector<2x128xf32> -> vector<2x128xf32>
      %c0_31 = arith.constant 0 : index
      %c0_32 = arith.constant 0 : index
      %33 = vector.load %arg5[%c0_31, %c0_32] : memref<128x128xf32, #tpu.memory_space<vmem>>, vector<128x128xf32>
      %cst_33 = arith.constant dense<0.000000e+00> : vector<2x128xf32>
      %34 = tpu.matmul %30, %33, %cst_33 {dimension_numbers = #tpu.dot_dimension_numbers<[1], [0], [0], [1], [0, 0, 1, 1], [], []>} : vector<2x128xf32>, vector<128x128xf32>, vector<2x128xf32> -> vector<2x128xf32>
      %35 = arith.addf %32, %34 : vector<2x128xf32>
      %c0_34 = arith.constant 0 : index
      %c0_35 = arith.constant 0 : index
      %36 = vector.load %arg6[%c0_34, %c0_35] : memref<1x128xf32, #tpu.memory_space<vmem>>, vector<1x128xf32>
      %37 = vector.broadcast %36 : vector<1x128xf32> to vector<2x128xf32>
      %38 = arith.addf %35, %37 : vector<2x128xf32>
      %cst_36 = arith.constant 0.000000e+00 : f32
      %39 = vector.broadcast %cst_36 : f32 to vector<2x128xf32>
      %40 = arith.maximumf %38, %39 : vector<2x128xf32>
      %c0_37 = arith.constant 0 : index
      %c0_38 = arith.constant 0 : index
      %41 = vector.load %arg7[%c0_37, %c0_38] : memref<128x128xf32, #tpu.memory_space<vmem>>, vector<128x128xf32>
      %cst_39 = arith.constant dense<0.000000e+00> : vector<2x128xf32>
      %42 = tpu.matmul %40, %41, %cst_39 {dimension_numbers = #tpu.dot_dimension_numbers<[1], [0], [0], [1], [0, 0, 1, 1], [], []>} : vector<2x128xf32>, vector<128x128xf32>, vector<2x128xf32> -> vector<2x128xf32>
      %c0_40 = arith.constant 0 : index
      %c0_41 = arith.constant 0 : index
      %43 = vector.load %arg8[%c0_40, %c0_41] : memref<1x128xf32, #tpu.memory_space<vmem>>, vector<1x128xf32>
      %44 = vector.broadcast %43 : vector<1x128xf32> to vector<2x128xf32>
      %45 = arith.addf %42, %44 : vector<2x128xf32>
      %c0_42 = arith.constant 0 : index
      %c0_43 = arith.constant 0 : index
      %46 = vector.load %arg9[%c0_42, %c0_43] : memref<2x128xf32, #tpu.memory_space<vmem>>, vector<2x128xf32>
      tpu.vector_store %arg9[%c0_42, %c0_43], %45 {strides = array<i32>} : memref<2x128xf32, #tpu.memory_space<vmem>>, vector<2x128xf32>,
    } else {
    }
    return
  }
  func.func @transform_0(%arg0: i32, %arg1: i32) -> (i32, i32, i32) {
    %c0_i32 = arith.constant 0 : i32
    %c0_i32_0 = arith.constant 0 : i32
    return %arg0, %arg1, %c0_i32 : i32, i32, i32
  }
  func.func @transform_1(%arg0: i32, %arg1: i32) -> (i32, i32) {
    %c0_i32 = arith.constant 0 : i32
    return %arg0, %arg1 : i32, i32
  }
  func.func @transform_2(%arg0: i32, %arg1: i32) -> (i32, i32) {
    %c0_i32 = arith.constant 0 : i32
    %c0_i32_0 = arith.constant 0 : i32
    %c0_i32_1 = arith.constant 0 : i32
    return %c0_i32, %c0_i32_0 : i32, i32
  }
  func.func @transform_3(%arg0: i32, %arg1: i32) -> (i32, i32) {
    %c0_i32 = arith.constant 0 : i32
    %c0_i32_0 = arith.constant 0 : i32
    %c0_i32_1 = arith.constant 0 : i32
    return %c0_i32, %c0_i32_0 : i32, i32
  }
  func.func @transform_4(%arg0: i32, %arg1: i32) -> (i32, i32) {
    %c0_i32 = arith.constant 0 : i32
    %c0_i32_0 = arith.constant 0 : i32
    %c0_i32_1 = arith.constant 0 : i32
    return %c0_i32, %c0_i32_0 : i32, i32
  }
  func.func @transform_5(%arg0: i32, %arg1: i32) -> (i32, i32) {
    %c0_i32 = arith.constant 0 : i32
    %c0_i32_0 = arith.constant 0 : i32
    %c0_i32_1 = arith.constant 0 : i32
    return %c0_i32, %c0_i32_0 : i32, i32
  }
  func.func @transform_6(%arg0: i32, %arg1: i32) -> (i32, i32) {
    %c0_i32 = arith.constant 0 : i32
    %c0_i32_0 = arith.constant 0 : i32
    %c0_i32_1 = arith.constant 0 : i32
    return %c0_i32, %c0_i32_0 : i32, i32
  }
  func.func @transform_7(%arg0: i32, %arg1: i32) -> (i32, i32) {
    %c0_i32 = arith.constant 0 : i32
    %c0_i32_0 = arith.constant 0 : i32
    return %arg0, %c0_i32 : i32, i32
  }
}

</mosaic_0001>

<llo_original>
// kernel: tpu_custom_call.1
$region0: #{tpu_custom_call.1}
  #allocation0 [shape = 'u32[]', space=smem, size = 0x4, offset = 0x4, fixed_abs, tag = 'smem constant byte address 0x4 - core index']
  #allocation1 [shape = 'u32[144,128]{1,0:T(1,128)}', space=vmem, size = 0x12000, scoped, tag = 'internal scratch']
  #allocation2 [shape = 'f32[2,128]{1,0:T(2,128)}', space=vmem, size = 0x400, scoped, tag = 'scratch operand']
  #allocation3 [shape = 'f32[2,128]{1,0:T(2,128)}', space=vmem, size = 0x400, scoped, tag = 'scratch operand']
  #allocation4 [shape = 'f32[2,1]{1,0:T(2,128)}', space=vmem, size = 0x400, scoped, tag = 'scratch operand']
  %s0 = inlined_call_operand.hbm [shape: f32[2,8,128], index: 0, kind: input, shape index: {}]
  %s1 = inlined_call_operand.vmem [shape: f32[2,8], index: 1, kind: input, shape index: {}]
  %s2 = inlined_call_operand.hbm [shape: f32[128,128], index: 2, kind: input, shape index: {}]
  %s3 = inlined_call_operand.hbm [shape: f32[128,128], index: 3, kind: input, shape index: {}]
  %s4 = inlined_call_operand.vmem [shape: f32[1,128], index: 4, kind: input, shape index: {}]
  %s5 = inlined_call_operand.hbm [shape: f32[128,128], index: 5, kind: input, shape index: {}]
  %s6 = inlined_call_operand.vmem [shape: f32[1,128], index: 6, kind: input, shape index: {}]
  %s7 = inlined_call_operand.hbm [shape: f32[2,128], index: 7, kind: output, shape index: {}]
  %s8 = sld [smem:[#allocation0]]
  $region62: #{tpu_custom_call.1} parent=0
    _
  %s10 = ssub.s32 1, %s8
  %s11 = scalar_select 0, %s10, %s8
  $region1: #{tpu_custom_call.1} parent=0
    #allocation5 [shape = 'u8[8192]{0}', space=vmem, size = 0x2000, scoped, tag = 'input window, operand 0, single buffered']
    #allocation6 [shape = 's32[1]{0}', space=sflag, size = 0x4, scoped, tag = 'scoped memory for tpu_custom_call.1']
    #allocation7 [shape = 's32[1]{0}', space=sflag, size = 0x4, scoped, tag = 'scoped memory for tpu_custom_call.1']
    #allocation8 [shape = 'u8[65536]{0}', space=vmem, size = 0x10000, scoped, tag = 'input window, operand 2, single buffered']
    #allocation9 [shape = 's32[1]{0}', space=sflag, size = 0x4, scoped, tag = 'scoped memory for tpu_custom_call.1']
    #allocation10 [shape = 'u8[65536]{0}', space=vmem, size = 0x10000, scoped, tag = 'input window, operand 3, single buffered']
    #allocation11 [shape = 'u8[65536]{0}', space=vmem, size = 0x10000, scoped, tag = 'input window, operand 5, single buffered']
    #allocation12 [shape = 's32[1]{0}', space=sflag, size = 0x4, scoped, tag = 'scoped memory for tpu_custom_call.1']
    #allocation13 [shape = 'u8[1024]{0}', space=vmem, size = 0x400, scoped, tag = 'output window, operand 0, single buffered']
    %12 = vsyncpa [#allocation6], 0
    %13 = vsyncpa [#allocation9], 0
    %14 = vsyncpa [#allocation12], 0
    %15 = vsyncpa [#allocation7], 0
    // Predicated region
    $region2: #{tpu_custom_call.1} parent=1 // pred_check
      _
    $region3: #{tpu_custom_call.1} parent=1 // pred_check_branch
      %17 = sbr.rel (0) target = $region5
    $region4: #{tpu_custom_call.1} parent=1 // pred_region
      %s19 = ssub.s32 256, 256
      %20 = vsyncadd [#allocation6], %s19
      %s21 = sshll.u32 [#allocation5], 4
      %s22 = int_to_ptr.vmem [resolvable:$true] %s21
      %27 = dma.hbm_to_vmem [thread:$0]  %s0, 256, %s22, [#allocation6], 128, 128, 8
    $region5: #{tpu_custom_call.1} parent=1 // pred_fallthru
      _
    // Predicated region
    $region6: #{tpu_custom_call.1} parent=1 // pred_check
      _
    $region7: #{tpu_custom_call.1} parent=1 // pred_check_branch
      %29 = sbr.rel (0) target = $region9
    $region8: #{tpu_custom_call.1} parent=1 // pred_region
      _
    $region9: #{tpu_custom_call.1} parent=1 // pred_fallthru
      _
    // Predicated region
    $region10: #{tpu_custom_call.1} parent=1 // pred_check
      _
    $region11: #{tpu_custom_call.1} parent=1 // pred_check_branch
      %31 = sbr.rel (0) target = $region13
    $region12: #{tpu_custom_call.1} parent=1 // pred_region
      %s33 = ssub.s32 2048, 2048
      %34 = vsyncadd [#allocation9], %s33
      %s35 = sshll.u32 [#allocation8], 4
      %s36 = int_to_ptr.vmem [resolvable:$true] %s35
      %41 = dma.hbm_to_vmem [thread:$0]  %s2, 2048, %s36, [#allocation9], 128, 128, 8
    $region13: #{tpu_custom_call.1} parent=1 // pred_fallthru
      _
    // Predicated region
    $region14: #{tpu_custom_call.1} parent=1 // pred_check
      _
    $region15: #{tpu_custom_call.1} parent=1 // pred_check_branch
      %43 = sbr.rel (0) target = $region17
    $region16: #{tpu_custom_call.1} parent=1 // pred_region
      %s45 = ssub.s32 2048, 2048
      %46 = vsyncadd [#allocation9], %s45
      %s47 = sshll.u32 [#allocation10], 4
      %s48 = int_to_ptr.vmem [resolvable:$true] %s47
      %53 = dma.hbm_to_vmem [thread:$0]  %s3, 2048, %s48, [#allocation9], 128, 128, 8
    $region17: #{tpu_custom_call.1} parent=1 // pred_fallthru
      _
    // Predicated region
    $region18: #{tpu_custom_call.1} parent=1 // pred_check
      _
    $region19: #{tpu_custom_call.1} parent=1 // pred_check_branch
      %55 = sbr.rel (0) target = $region21
    $region20: #{tpu_custom_call.1} parent=1 // pred_region
      _
    $region21: #{tpu_custom_call.1} parent=1 // pred_fallthru
      _
    // Predicated region
    $region22: #{tpu_custom_call.1} parent=1 // pred_check
      _
    $region23: #{tpu_custom_call.1} parent=1 // pred_check_branch
      %57 = sbr.rel (0) target = $region25
    $region24: #{tpu_custom_call.1} parent=1 // pred_region
      %s59 = ssub.s32 2048, 2048
      %60 = vsyncadd [#allocation12], %s59
      %s61 = sshll.u32 [#allocation11], 4
      %s62 = int_to_ptr.vmem [resolvable:$true] %s61
      %67 = dma.hbm_to_vmem [thread:$0]  %s5, 2048, %s62, [#allocation12], 128, 128, 8
    $region25: #{tpu_custom_call.1} parent=1 // pred_fallthru
      _
    // Predicated region
    $region26: #{tpu_custom_call.1} parent=1 // pred_check
      _
    $region27: #{tpu_custom_call.1} parent=1 // pred_check_branch
      %69 = sbr.rel (0) target = $region29
    $region28: #{tpu_custom_call.1} parent=1 // pred_region
      _
    $region29: #{tpu_custom_call.1} parent=1 // pred_fallthru
      _
    // Predicated region
    $region30: #{tpu_custom_call.1} parent=1 // pred_check
      _
    $region31: #{tpu_custom_call.1} parent=1 // pred_check_branch
      %71 = sbr.rel (0) target = $region33
    $region32: #{tpu_custom_call.1} parent=1 // pred_region
      %72 = dma.done [#allocation6], 256
    $region33: #{tpu_custom_call.1} parent=1 // pred_fallthru
      _
    // Predicated region
    $region34: #{tpu_custom_call.1} parent=1 // pred_check
      _
    $region35: #{tpu_custom_call.1} parent=1 // pred_check_branch
      %74 = sbr.rel (0) target = $region37
    $region36: #{tpu_custom_call.1} parent=1 // pred_region
      %75 = dma.done [#allocation9], 2048
    $region37: #{tpu_custom_call.1} parent=1 // pred_fallthru
      _
    // Predicated region
    $region38: #{tpu_custom_call.1} parent=1 // pred_check
      _
    $region39: #{tpu_custom_call.1} parent=1 // pred_check_branch
      %77 = sbr.rel (0) target = $region41
    $region40: #{tpu_custom_call.1} parent=1 // pred_region
      %78 = dma.done [#allocation9], 2048
    $region41: #{tpu_custom_call.1} parent=1 // pred_fallthru
      _
    // Predicated region
    $region42: #{tpu_custom_call.1} parent=1 // pred_check
      _
    $region43: #{tpu_custom_call.1} parent=1 // pred_check_branch
      %80 = sbr.rel (0) target = $region45
    $region44: #{tpu_custom_call.1} parent=1 // pred_region
      %81 = dma.done [#allocation12], 2048
    $region45: #{tpu_custom_call.1} parent=1 // pred_fallthru
      _
    %p82 = scmp.eq.s32.totalorder 0, 0
    // Predicated region
    $region46: #{tpu_custom_call.1} parent=1 // pred_check
      %p83 = pneg %p82
    $region47: #{tpu_custom_call.1} parent=1 // pred_check_branch
      %85 = sbr.rel (%p83) target = $region49
    $region48: #{tpu_custom_call.1} parent=1 // pred_region
      %86 = vst [vmem:[#allocation2] sm:$0x3] 0.0
      %87 = vst [vmem:[#allocation3] sm:$0x3] -inf
      %vm88 = vcmask 1024
      %89 = vst.msk [vmem:[#allocation4] sm:$0x3] %vm88, 0.0
    $region49: #{tpu_custom_call.1} parent=1 // pred_fallthru
      _
    %v90 = vld [vmem:[#allocation5] sm:$0xff]
    %v91 = vld [vmem:[#allocation5 + $0x8] sm:$0xff]
    %v92 = vld [vmem:[%s1] sm:$0x3]
    %v93 = vlaneseq
    %v94 = vshrl.u32 %v93, 7
    %v95 = vsub.s32 0, %v94
    %v96 = vrot.slane %v92, %v95
    %98 = vbcast.lane.b32.xlu0 %v96, 256
    %v99 = vpop.permute.xlu0 %98
    %v100 = vlaneseq
    %v101 = vshrl.u32 %v100, 7
    %v102 = vsub.s32 1, %v101
    %v103 = vrot.slane %v92, %v102
    %105 = vbcast.lane.b32.xlu0 %v103, 256
    %v106 = vpop.permute.xlu0 %105
    %v107 = vmul.f32 %v90, %v99
    %v108 = vmul.f32 %v91, %v106
    %v109 = vld [vmem:[#allocation2] sm:$0x3]
    %v110 = vrot.slane %v107, 4
    %v111 = vadd.f32 %v107, %v110
    %v112 = vrot.slane %v111, 2
    %v113 = vadd.f32 %v111, %v112
    %v114 = vrot.slane %v113, 1
    %v115 = vadd.f32 %v113, %v114
    %v116 = vrot.slane %v108, 4
    %v117 = vadd.f32 %v108, %v116
    %v118 = vrot.slane %v117, 2
    %v119 = vadd.f32 %v117, %v118
    %v120 = vrot.slane %v119, 1
    %v121 = vadd.f32 %v119, %v120
    %vm124 = vcmask 1041409
    %v125 = vsel %vm124, %v121, %v115
    %v127 = vadd.f32 %v109, %v125
    %128 = vst [vmem:[#allocation2] sm:$0x3] %v127
    %v129 = vld [vmem:[#allocation3] sm:$0x3]
    %v130 = vrot.slane %v107, 4
    %v131 = vmax.f32 %v107, %v130
    %v132 = vrot.slane %v131, 2
    %v133 = vmax.f32 %v131, %v132
    %v134 = vrot.slane %v133, 1
    %v135 = vmax.f32 %v133, %v134
    %v136 = vrot.slane %v108, 4
    %v137 = vmax.f32 %v108, %v136
    %v138 = vrot.slane %v137, 2
    %v139 = vmax.f32 %v137, %v138
    %v140 = vrot.slane %v139, 1
    %v141 = vmax.f32 %v139, %v140
    %v144 = vsel %vm124, %v141, %v135
    %v146 = vmax.f32 %v129, %v144
    %147 = vst [vmem:[#allocation3] sm:$0x3] %v146
    %v148 = vld [vmem:[#allocation4] sm:$0x3]
    %vm149 = vcmask 58368
    %v150 = vsel %vm149, %v92, 0.0
    %151 = vadd.xlane.f32.xlu0 %v150
    %v152 = vpop.xlane.xlu0 %151
    %v153 = vadd.f32 %v148, %v152
    %vm154 = vcmask 1024
    %155 = vst.msk [vmem:[#allocation4] sm:$0x3] %vm154, %v153
    // Predicated region
    $region50: #{tpu_custom_call.1} parent=1 // pred_check
      %p156 = pneg %p82
    $region51: #{tpu_custom_call.1} parent=1 // pred_check_branch
      %158 = sbr.rel (%p156) target = $region53
    $region52: #{tpu_custom_call.1} parent=1 // pred_region
      %v159 = vld [vmem:[#allocation2] sm:$0x3]
      %v160 = vld [vmem:[#allocation4] sm:$0x3]
      %v161 = vmax.f32 %v160, 1e-09
      %163 = vset.pattern.permute.xlu0 0
      %164 = vperm.xlu0 %163, %v161
      %v165 = vpop.permute.xlu0 %164
      %v167 = vrcp.pop %v165
      %v168 = vmul.f32 %v159, %v167
      %v169 = vld [vmem:[#allocation3] sm:$0x3]
      %v170 = vld [vmem:[#allocation8] sm:$0xff]
      %v171 = vld [vmem:[#allocation8 + $0x8] sm:$0xff]
      %v172 = vld [vmem:[#allocation8 + $0x10] sm:$0xff]
      %v173 = vld [vmem:[#allocation8 + $0x18] sm:$0xff]
      %v174 = vld [vmem:[#allocation8 + $0x20] sm:$0xff]
      %v175 = vld [vmem:[#allocation8 + $0x28] sm:$0xff]
      %v176 = vld [vmem:[#allocation8 + $0x30] sm:$0xff]
      %v177 = vld [vmem:[#allocation8 + $0x38] sm:$0xff]
      %v178 = vld [vmem:[#allocation8 + $0x40] sm:$0xff]
      %v179 = vld [vmem:[#allocation8 + $0x48] sm:$0xff]
      %v180 = vld [vmem:[#allocation8 + $0x50] sm:$0xff]
      %v181 = vld [vmem:[#allocation8 + $0x58] sm:$0xff]
      %v182 = vld [vmem:[#allocation8 + $0x60] sm:$0xff]
      %v183 = vld [vmem:[#allocation8 + $0x68] sm:$0xff]
      %v184 = vld [vmem:[#allocation8 + $0x70] sm:$0xff]
      %v185 = vld [vmem:[#allocation8 + $0x78] sm:$0xff]
      %v186 = vld [vmem:[#allocation10] sm:$0xff]
      %v187 = vld [vmem:[#allocation10 + $0x8] sm:$0xff]
      %v188 = vld [vmem:[#allocation10 + $0x10] sm:$0xff]
      %v189 = vld [vmem:[#allocation10 + $0x18] sm:$0xff]
      %v190 = vld [vmem:[#allocation10 + $0x20] sm:$0xff]
      %v191 = vld [vmem:[#allocation10 + $0x28] sm:$0xff]
      %v192 = vld [vmem:[#allocation10 + $0x30] sm:$0xff]
      %v193 = vld [vmem:[#allocation10 + $0x38] sm:$0xff]
      %v194 = vld [vmem:[#allocation10 + $0x40] sm:$0xff]
      %v195 = vld [vmem:[#allocation10 + $0x48] sm:$0xff]
      %v196 = vld [vmem:[#allocation10 + $0x50] sm:$0xff]
      %v197 = vld [vmem:[#allocation10 + $0x58] sm:$0xff]
      %v198 = vld [vmem:[#allocation10 + $0x60] sm:$0xff]
      %v199 = vld [vmem:[#allocation10 + $0x68] sm:$0xff]
      %v200 = vld [vmem:[#allocation10 + $0x70] sm:$0xff]
      %v201 = vld [vmem:[#allocation10 + $0x78] sm:$0xff]
      %202 = vmatprep.subr.mxu0 0.0
      %203 = vmatpush1.msra.mxu0 %v186
      %204 = vmatprep.subr.mxu0 0.0
      %205 = vmatpush1.msra.mxu0 %v187
      %206 = vmatprep.subr.mxu0 0.0
      %207 = vmatpush1.msra.mxu0 %v188
      %208 = vmatprep.subr.mxu0 0.0
      %209 = vmatpush1.msra.mxu0 %v189
      %210 = vmatprep.subr.mxu0 0.0
      %211 = vmatpush1.msra.mxu0 %v190
      %212 = vmatprep.subr.mxu0 0.0
      %213 = vmatpush1.msra.mxu0 %v191
      %214 = vmatprep.subr.mxu0 0.0
      %215 = vmatpush1.msra.mxu0 %v192
      %216 = vmatprep.subr.mxu0 0.0
      %217 = vmatpush1.msra.mxu0 %v193
      %218 = vmatprep.subr.mxu0 0.0
      %219 = vmatpush1.msra.mxu0 %v194
      %220 = vmatprep.subr.mxu0 0.0
      %221 = vmatpush1.msra.mxu0 %v195
      %222 = vmatprep.subr.mxu0 0.0
      %223 = vmatpush1.msra.mxu0 %v196
      %224 = vmatprep.subr.mxu0 0.0
      %225 = vmatpush1.msra.mxu0 %v197
      %226 = vmatprep.subr.mxu0 0.0
      %227 = vmatpush1.msra.mxu0 %v198
      %228 = vmatprep.subr.mxu0 0.0
      %229 = vmatpush1.msra.mxu0 %v199
      %230 = vmatprep.subr.mxu0 0.0
      %231 = vmatpush1.msra.mxu0 %v200
      %232 = vmatprep.subr.mxu0 0.0
      %233 = vmatpush1.msra.mxu0 %v201
      %234 = vmatprep.subr.mxu0 0.0
      %235 = vmatpush1.msra.mxu0 0.0
      %236 = vmatprep.subr.mxu0 0.0
      %237 = vmatpush1.msra.mxu0 0.0
      %238 = vmatprep.subr.mxu0 0.0
      %239 = vmatpush1.msra.mxu0 0.0
      %240 = vmatprep.subr.mxu0 0.0
      %241 = vmatpush1.msra.mxu0 0.0
      %242 = vmatprep.subr.mxu0 0.0
      %243 = vmatpush1.msra.mxu0 0.0
      %244 = vmatprep.subr.mxu0 0.0
      %245 = vmatpush1.msra.mxu0 0.0
      %246 = vmatprep.subr.mxu0 0.0
      %247 = vmatpush1.msra.mxu0 0.0
      %248 = vmatprep.subr.mxu0 0.0
      %249 = vmatpush1.msra.mxu0 0.0
      %250 = vmatprep.subr.mxu0 0.0
      %251 = vmatpush1.msra.mxu0 0.0
      %252 = vmatprep.subr.mxu0 0.0
      %253 = vmatpush1.msra.mxu0 0.0
      %254 = vmatprep.subr.mxu0 0.0
      %255 = vmatpush1.msra.mxu0 0.0
      %256 = vmatprep.subr.mxu0 0.0
      %257 = vmatpush1.msra.mxu0 0.0
      %258 = vmatprep.subr.mxu0 0.0
      %259 = vmatpush1.msra.mxu0 0.0
      %260 = vmatprep.subr.mxu0 0.0
      %261 = vmatpush1.msra.mxu0 0.0
      %262 = vmatprep.subr.mxu0 0.0
      %263 = vmatpush1.msra.mxu0 0.0
      %264 = vmatprep.subr.mxu0 0.0
      %265 = vmatpush1.msra.mxu0 0.0
      %266 = vmatprep.mubr.f32.mxu0 0.0
      %267 = vmatmul.mubr.f32.gmra.mrb[0].mxu0 %v169
      %v268 = vpop.f32.mrb[0].mxu0
      %v269 = vadd.f32 0.0, %v268
      %v270 = vpop.f32.mrb[0].mxu0
      %271 = vdwg.mxu0
      %272 = vmatprep.subr.mxu0 0.0
      %273 = vmatpush1.msra.mxu0 %v170
      %274 = vmatprep.subr.mxu0 0.0
      %275 = vmatpush1.msra.mxu0 %v171
      %276 = vmatprep.subr.mxu0 0.0
      %277 = vmatpush1.msra.mxu0 %v172
      %278 = vmatprep.subr.mxu0 0.0
      %279 = vmatpush1.msra.mxu0 %v173
      %280 = vmatprep.subr.mxu0 0.0
      %281 = vmatpush1.msra.mxu0 %v174
      %282 = vmatprep.subr.mxu0 0.0
      %283 = vmatpush1.msra.mxu0 %v175
      %284 = vmatprep.subr.mxu0 0.0
      %285 = vmatpush1.msra.mxu0 %v176
      %286 = vmatprep.subr.mxu0 0.0
      %287 = vmatpush1.msra.mxu0 %v177
      %288 = vmatprep.subr.mxu0 0.0
      %289 = vmatpush1.msra.mxu0 %v178
      %290 = vmatprep.subr.mxu0 0.0
      %291 = vmatpush1.msra.mxu0 %v179
      %292 = vmatprep.subr.mxu0 0.0
      %293 = vmatpush1.msra.mxu0 %v180
      %294 = vmatprep.subr.mxu0 0.0
      %295 = vmatpush1.msra.mxu0 %v181
      %296 = vmatprep.subr.mxu0 0.0
      %297 = vmatpush1.msra.mxu0 %v182
      %298 = vmatprep.subr.mxu0 0.0
      %299 = vmatpush1.msra.mxu0 %v183
      %300 = vmatprep.subr.mxu0 0.0
      %301 = vmatpush1.msra.mxu0 %v184
      %302 = vmatprep.subr.mxu0 0.0
      %303 = vmatpush1.msra.mxu0 %v185
      %304 = vmatprep.subr.mxu0 0.0
      %305 = vmatpush1.msra.mxu0 0.0
      %306 = vmatprep.subr.mxu0 0.0
      %307 = vmatpush1.msra.mxu0 0.0
      %308 = vmatprep.subr.mxu0 0.0
      %309 = vmatpush1.msra.mxu0 0.0
      %310 = vmatprep.subr.mxu0 0.0
      %311 = vmatpush1.msra.mxu0 0.0
      %312 = vmatprep.subr.mxu0 0.0
      %313 = vmatpush1.msra.mxu0 0.0
      %314 = vmatprep.subr.mxu0 0.0
      %315 = vmatpush1.msra.mxu0 0.0
      %316 = vmatprep.subr.mxu0 0.0
      %317 = vmatpush1.msra.mxu0 0.0
      %318 = vmatprep.subr.mxu0 0.0
      %319 = vmatpush1.msra.mxu0 0.0
      %320 = vmatprep.subr.mxu0 0.0
      %321 = vmatpush1.msra.mxu0 0.0
      %322 = vmatprep.subr.mxu0 0.0
      %323 = vmatpush1.msra.mxu0 0.0
      %324 = vmatprep.subr.mxu0 0.0
      %325 = vmatpush1.msra.mxu0 0.0
      %326 = vmatprep.subr.mxu0 0.0
      %327 = vmatpush1.msra.mxu0 0.0
      %328 = vmatprep.subr.mxu0 0.0
      %329 = vmatpush1.msra.mxu0 0.0
      %330 = vmatprep.subr.mxu0 0.0
      %331 = vmatpush1.msra.mxu0 0.0
      %332 = vmatprep.subr.mxu0 0.0
      %333 = vmatpush1.msra.mxu0 0.0
      %334 = vmatprep.subr.mxu0 0.0
      %335 = vmatpush1.msra.mxu0 0.0
      %336 = vmatprep.mubr.f32.mxu0 0.0
      %337 = vmatmul.mubr.f32.gmra.mrb[0].mxu0 %v168
      %v338 = vpop.f32.mrb[0].mxu0
      %v339 = vadd.f32 %v269, %v338
      %v340 = vpop.f32.mrb[0].mxu0
      %341 = vdwg.mxu0
      %v342 = vld [vmem:[%s4] sm:$0x1]
      %v344 = vlaneseq
      %v345 = vshrl.u32 %v344, 7
      %v346 = vsub.s32 0, %v345
      %v347 = vrot.slane %v342, %v346
      %v349 = vadd.f32 %v339, %v347
      %v350 = vmax.f32 %v349, 0.0
      %v351 = vld [vmem:[#allocation11] sm:$0xff]
      %v352 = vld [vmem:[#allocation11 + $0x8] sm:$0xff]
      %v353 = vld [vmem:[#allocation11 + $0x10] sm:$0xff]
      %v354 = vld [vmem:[#allocation11 + $0x18] sm:$0xff]
      %v355 = vld [vmem:[#allocation11 + $0x20] sm:$0xff]
      %v356 = vld [vmem:[#allocation11 + $0x28] sm:$0xff]
      %v357 = vld [vmem:[#allocation11 + $0x30] sm:$0xff]
      %v358 = vld [vmem:[#allocation11 + $0x38] sm:$0xff]
      %v359 = vld [vmem:[#allocation11 + $0x40] sm:$0xff]
      %v360 = vld [vmem:[#allocation11 + $0x48] sm:$0xff]
      %v361 = vld [vmem:[#allocation11 + $0x50] sm:$0xff]
      %v362 = vld [vmem:[#allocation11 + $0x58] sm:$0xff]
      %v363 = vld [vmem:[#allocation11 + $0x60] sm:$0xff]
      %v364 = vld [vmem:[#allocation11 + $0x68] sm:$0xff]
      %v365 = vld [vmem:[#allocation11 + $0x70] sm:$0xff]
      %v366 = vld [vmem:[#allocation11 + $0x78] sm:$0xff]
      %v367 = vld [vmem:[%s6] sm:$0x1]
      %v369 = vlaneseq
      %v370 = vshrl.u32 %v369, 7
      %v371 = vsub.s32 0, %v370
      %v372 = vrot.slane %v367, %v371
      %374 = vmatprep.subr.mxu0 0.0
      %375 = vmatpush1.msra.mxu0 %v351
      %376 = vmatprep.subr.mxu0 0.0
      %377 = vmatpush1.msra.mxu0 %v352
      %378 = vmatprep.subr.mxu0 0.0
      %379 = vmatpush1.msra.mxu0 %v353
      %380 = vmatprep.subr.mxu0 0.0
      %381 = vmatpush1.msra.mxu0 %v354
      %382 = vmatprep.subr.mxu0 0.0
      %383 = vmatpush1.msra.mxu0 %v355
      %384 = vmatprep.subr.mxu0 0.0
      %385 = vmatpush1.msra.mxu0 %v356
      %386 = vmatprep.subr.mxu0 0.0
      %387 = vmatpush1.msra.mxu0 %v357
      %388 = vmatprep.subr.mxu0 0.0
      %389 = vmatpush1.msra.mxu0 %v358
      %390 = vmatprep.subr.mxu0 0.0
      %391 = vmatpush1.msra.mxu0 %v359
      %392 = vmatprep.subr.mxu0 0.0
      %393 = vmatpush1.msra.mxu0 %v360
      %394 = vmatprep.subr.mxu0 0.0
      %395 = vmatpush1.msra.mxu0 %v361
      %396 = vmatprep.subr.mxu0 0.0
      %397 = vmatpush1.msra.mxu0 %v362
      %398 = vmatprep.subr.mxu0 0.0
      %399 = vmatpush1.msra.mxu0 %v363
      %400 = vmatprep.subr.mxu0 0.0
      %401 = vmatpush1.msra.mxu0 %v364
      %402 = vmatprep.subr.mxu0 0.0
      %403 = vmatpush1.msra.mxu0 %v365
      %404 = vmatprep.subr.mxu0 0.0
      %405 = vmatpush1.msra.mxu0 %v366
      %406 = vmatprep.subr.mxu0 0.0
      %407 = vmatpush1.msra.mxu0 0.0
      %408 = vmatprep.subr.mxu0 0.0
      %409 = vmatpush1.msra.mxu0 0.0
      %410 = vmatprep.subr.mxu0 0.0
      %411 = vmatpush1.msra.mxu0 0.0
      %412 = vmatprep.subr.mxu0 0.0
      %413 = vmatpush1.msra.mxu0 0.0
      %414 = vmatprep.subr.mxu0 0.0
      %415 = vmatpush1.msra.mxu0 0.0
      %416 = vmatprep.subr.mxu0 0.0
      %417 = vmatpush1.msra.mxu0 0.0
      %418 = vmatprep.subr.mxu0 0.0
      %419 = vmatpush1.msra.mxu0 0.0
      %420 = vmatprep.subr.mxu0 0.0
      %421 = vmatpush1.msra.mxu0 0.0
      %422 = vmatprep.subr.mxu0 0.0
      %423 = vmatpush1.msra.mxu0 0.0
      %424 = vmatprep.subr.mxu0 0.0
      %425 = vmatpush1.msra.mxu0 0.0
      %426 = vmatprep.subr.mxu0 0.0
      %427 = vmatpush1.msra.mxu0 0.0
      %428 = vmatprep.subr.mxu0 0.0
      %429 = vmatpush1.msra.mxu0 0.0
      %430 = vmatprep.subr.mxu0 0.0
      %431 = vmatpush1.msra.mxu0 0.0
      %432 = vmatprep.subr.mxu0 0.0
      %433 = vmatpush1.msra.mxu0 0.0
      %434 = vmatprep.subr.mxu0 0.0
      %435 = vmatpush1.msra.mxu0 0.0
      %436 = vmatprep.subr.mxu0 0.0
      %437 = vmatpush1.msra.mxu0 0.0
      %438 = vmatprep.mubr.f32.mxu0 0.0
      %439 = vmatmul.mubr.f32.gmra.mrb[0].mxu0 %v350
      %v440 = vpop.f32.mrb[0].mxu0
      %v441 = vadd.f32 %v372, %v440
      %v442 = vpop.f32.mrb[0].mxu0
      %443 = vdwg.mxu0
      %444 = vst [vmem:[#allocation13] sm:$0x3] %v441
    $region53: #{tpu_custom_call.1} parent=1 // pred_fallthru
      _
    // Predicated region
    $region54: #{tpu_custom_call.1} parent=1 // pred_check
      _
    $region55: #{tpu_custom_call.1} parent=1 // pred_check_branch
      %446 = sbr.rel (0) target = $region57
    $region56: #{tpu_custom_call.1} parent=1 // pred_region
      %s448 = ssub.s32 32, 32
      %449 = vsyncadd [#allocation7], %s448
      %s451 = sshll.u32 [#allocation13], 4
      %s452 = int_to_ptr.vmem [resolvable:$true] %s451
      %454 = dma.vmem_to_hbm [thread:$0]  %s452, 32, %s7, [#allocation7]
    $region57: #{tpu_custom_call.1} parent=1 // pred_fallthru
      _
    // Predicated region
    $region58: #{tpu_custom_call.1} parent=1 // pred_check
      _
    $region59: #{tpu_custom_call.1} parent=1 // pred_check_branch
      %456 = sbr.rel (0) target = $region61
    $region60: #{tpu_custom_call.1} parent=1 // pred_region
      %457 = dma.done [#allocation7], 32
    $region61: #{tpu_custom_call.1} parent=1 // pred_fallthru
      _
    %458 = vsyncpa [#allocation6], 1
    %459 = vsyncpa [#allocation9], 1
    %460 = vsyncpa [#allocation12], 1
    %461 = vsyncpa [#allocation7], 1

</llo_original>
